<compile_context>
chip_gen: v7x
topology: tpu7x:2x2x1
jax: 0.10.0
libtpu: 0.0.40
codegen_flags: <defaults>
</compile_context>

<pallas_src>
import jax
import jax.numpy as jnp
from jax.experimental import pallas as pl
from jax.experimental.pallas import tpu as pltpu

IN_C, IMG_H, IMG_W = 1, 28, 28
D_IN = IN_C * IMG_H * IMG_W          # 784
D_HID = 256                          # hidden width (multiple of 128)


def ae_mlp_kernel(x_ref, w1_ref, b1_ref, w2_ref, b2_ref, o_ref):
    # Fused 2-layer MLP for one batch tile.
    # bf16 MXU operands with f32 accumulation; all elementwise work (bias,
    # ReLU, sigmoid) is done in f32 on the VPU/EUP.
    x = x_ref[...].astype(jnp.bfloat16)                               # (tb, 784)
    h = jnp.dot(x, w1_ref[...], preferred_element_type=jnp.float32)   # (tb, 256) f32
    h = jnp.maximum(h + b1_ref[...], 0.0)                             # bias + ReLU
    y = jnp.dot(h.astype(jnp.bfloat16), w2_ref[...],
                preferred_element_type=jnp.float32)                   # (tb, 784) f32
    y = y + b2_ref[...]
    o_ref[...] = jax.nn.sigmoid(y).astype(o_ref.dtype)                # Sigmoid


def _round_up(x, m):
    return (x + m - 1) // m * m


def _choose_tile_b(B, max_tile_b):
    """Pick a batch tile: large (fewer grid steps / less per-step overhead),
    even step count when >1 step (v7x has 2 TensorCores on the parallel axis),
    and minimal ragged-batch padding (waste <= 8 rows per step)."""
    b8 = _round_up(max(B, 1), 8)
    if b8 <= 8:
        return 8
    if b8 <= 2 * max_tile_b:
        # Exactly two tiles: both v7x TCs busy, at most 8 rows of padding.
        return max(8, _round_up(pl.cdiv(b8, 2), 8))
    steps = pl.cdiv(b8, max_tile_b)
    if steps % 2:                      # keep step count even for v7x
        steps += 1
    return max(8, _round_up(pl.cdiv(b8, steps), 8))


def prepare_params(params):
    """One-time cast to kernel-ready layout (hoisted out of the forward path):
    weights bf16 for the MXU, biases f32 for the VPU."""
    w1, b1, w2, b2 = params          # f32: (784,256) (1,256) (256,784) (1,784)
    return (w1.astype(jnp.bfloat16),
            b1.reshape(1, D_HID).astype(jnp.float32),
            w2.astype(jnp.bfloat16),
            b2.reshape(1, D_IN).astype(jnp.float32))


def basic_ae_forward(x_nchw, prepared_params, *, max_tile_b=512,
                     out_dtype=jnp.bfloat16):
    """ATN.forward: x (B,1,28,28) -> reconstructed (B,784).

    Output is bf16 by default (halves HBM writeback); pass
    out_dtype=jnp.float32 if a downstream consumer needs f32.
    """
    w1_bf, b1_f, w2_bf, b2_f = prepared_params
    B = x_nchw.shape[0]
    x_flat = x_nchw.reshape(B, D_IN).astype(jnp.float32)   # free reshape/view

    tile_b = _choose_tile_b(B, max_tile_b)
    steps = pl.cdiv(_round_up(B, 8), tile_b)
    b_pad = steps * tile_b
    if b_pad != B:
        # Only row padding (zeros); padded rows compute sigmoid(b2), sliced away.
        x_flat = jnp.pad(x_flat, ((0, b_pad - B), (0, 0)))

    resident = dict(pipeline_mode=pl.Buffered(1))   # grid-invariant blocks

    out_p = pl.pallas_call(
        ae_mlp_kernel,
        out_shape=jax.ShapeDtypeStruct((b_pad, D_IN), out_dtype),
        grid_spec=pltpu.PrefetchScalarGridSpec(
            num_scalar_prefetch=0,
            grid=(steps,),
            in_specs=[
                # Last dim equals full array dim (784) -> legal block shape.
                pl.BlockSpec((tile_b, D_IN), lambda i: (i, 0)),               # x tile
                pl.BlockSpec((D_IN, D_HID), lambda i: (0, 0), **resident),    # W1
                pl.BlockSpec((1, D_HID), lambda i: (0, 0), **resident),       # b1
                pl.BlockSpec((D_HID, D_IN), lambda i: (0, 0), **resident),    # W2
                pl.BlockSpec((1, D_IN), lambda i: (0, 0), **resident),        # b2
            ],
            out_specs=pl.BlockSpec((tile_b, D_IN), lambda i: (i, 0)),
        ),
        compiler_params=pltpu.CompilerParams(
            dimension_semantics=("parallel",)),
    )(x_flat, w1_bf, b1_f, w2_bf, b2_f)

    return out_p[:B] if b_pad != B else out_p


def init_params(key):
    k1, k2, k3, k4 = jax.random.split(key, 4)
    # deterministic, small-scale init (Glorot-ish)
    w1 = jax.random.normal(k1, (D_IN, D_HID), jnp.float32) * (1.0 / jnp.sqrt(D_IN))
    b1 = jax.random.normal(k2, (1, D_HID), jnp.float32) * 0.01
    w2 = jax.random.normal(k3, (D_HID, D_IN), jnp.float32) * (1.0 / jnp.sqrt(D_HID))
    b2 = jax.random.normal(k4, (1, D_IN), jnp.float32) * 0.01
    return w1, b1, w2, b2


def reference_forward(x_nchw, params):
    w1, b1, w2, b2 = params
    x = x_nchw.reshape(x_nchw.shape[0], D_IN)
    h = jnp.maximum(x @ w1 + b1, 0.0)
    return jax.nn.sigmoid(h @ w2 + b2)


if __name__ == "__main__":
    key = jax.random.PRNGKey(0)
    k_params, k_x = jax.random.split(key)

    params = init_params(k_params)
    prepared = prepare_params(params)       # hoisted one-time cast

    B = 8
    x = jax.random.uniform(k_x, (B, IN_C, IMG_H, IMG_W), jnp.float32)  # NCHW

    out = basic_ae_forward(x, prepared)
    out = jax.block_until_ready(out)

    ref = reference_forward(x, params)
    assert out.shape == (B, D_IN)
    # bf16 MXU operands + bf16 output -> loosened tolerance vs f32 reference
    err = jnp.max(jnp.abs(out.astype(jnp.float32) - ref))
    assert jnp.allclose(out.astype(jnp.float32), ref, atol=3e-2, rtol=0.0), float(err)

    print("KERNEL_OK")
</pallas_src>

<mosaic_0001>
module attributes {stable_mosaic.version = 11 : i64} {
  func.func @ae_mlp_kernel(%arg0: i32, %arg1: memref<8x784xf32, #tpu.memory_space<vmem>>, %arg2: memref<784x256xbf16, #tpu.memory_space<vmem>>, %arg3: memref<1x256xf32, #tpu.memory_space<vmem>>, %arg4: memref<256x784xbf16, #tpu.memory_space<vmem>>, %arg5: memref<1x784xf32, #tpu.memory_space<vmem>>, %arg6: memref<8x784xbf16, #tpu.memory_space<vmem>>) attributes {dimension_semantics = [#tpu.dimension_semantics<parallel>], iteration_bounds = array<i64: 1>, scalar_prefetch = 0 : i64, scratch_operands = 0 : i64, tpu.core_type = #tpu.core_type<tc>, window_params = [{transform_indices = @transform_0, window_bounds = array<i64: 8, 784>}, {pipeline_mode = #tpu.pipeline_mode<synchronous>, transform_indices = @transform_1, window_bounds = array<i64: 784, 256>}, {pipeline_mode = #tpu.pipeline_mode<synchronous>, transform_indices = @transform_2, window_bounds = array<i64: 1, 256>}, {pipeline_mode = #tpu.pipeline_mode<synchronous>, transform_indices = @transform_3, window_bounds = array<i64: 256, 784>}, {pipeline_mode = #tpu.pipeline_mode<synchronous>, transform_indices = @transform_4, window_bounds = array<i64: 1, 784>}, {transform_indices = @transform_5, window_bounds = array<i64: 8, 784>}]} {
    %c0 = arith.constant 0 : index
    %c0_0 = arith.constant 0 : index
    %0 = vector.load %arg1[%c0, %c0_0] : memref<8x784xf32, #tpu.memory_space<vmem>>, vector<8x784xf32>
    %1 = arith.truncf %0 : vector<8x784xf32> to vector<8x784xbf16>
    %c0_1 = arith.constant 0 : index
    %c0_2 = arith.constant 0 : index
    %2 = vector.load %arg2[%c0_1, %c0_2] : memref<784x256xbf16, #tpu.memory_space<vmem>>, vector<784x256xbf16>
    %cst = arith.constant dense<0.000000e+00> : vector<8x256xf32>
    %3 = tpu.matmul %1, %2, %cst {dimension_numbers = #tpu.dot_dimension_numbers<[1], [0], [0], [1], [0, 0, 1, 1], [], []>} : vector<8x784xbf16>, vector<784x256xbf16>, vector<8x256xf32> -> vector<8x256xf32>
    %c0_3 = arith.constant 0 : index
    %c0_4 = arith.constant 0 : index
    %4 = vector.load %arg3[%c0_3, %c0_4] : memref<1x256xf32, #tpu.memory_space<vmem>>, vector<1x256xf32>
    %5 = vector.broadcast %4 : vector<1x256xf32> to vector<8x256xf32>
    %6 = arith.addf %3, %5 : vector<8x256xf32>
    %cst_5 = arith.constant 0.000000e+00 : f32
    %7 = vector.broadcast %cst_5 : f32 to vector<8x256xf32>
    %8 = arith.maximumf %6, %7 : vector<8x256xf32>
    %9 = arith.truncf %8 : vector<8x256xf32> to vector<8x256xbf16>
    %c0_6 = arith.constant 0 : index
    %c0_7 = arith.constant 0 : index
    %10 = vector.load %arg4[%c0_6, %c0_7] : memref<256x784xbf16, #tpu.memory_space<vmem>>, vector<256x784xbf16>
    %cst_8 = arith.constant dense<0.000000e+00> : vector<8x784xf32>
    %11 = tpu.matmul %9, %10, %cst_8 {dimension_numbers = #tpu.dot_dimension_numbers<[1], [0], [0], [1], [0, 0, 1, 1], [], []>} : vector<8x256xbf16>, vector<256x784xbf16>, vector<8x784xf32> -> vector<8x784xf32>
    %c0_9 = arith.constant 0 : index
    %c0_10 = arith.constant 0 : index
    %12 = vector.load %arg5[%c0_9, %c0_10] : memref<1x784xf32, #tpu.memory_space<vmem>>, vector<1x784xf32>
    %13 = vector.broadcast %12 : vector<1x784xf32> to vector<8x784xf32>
    %14 = arith.addf %11, %13 : vector<8x784xf32>
    %15 = arith.negf %14 : vector<8x784xf32>
    %16 = math.exp %15 : vector<8x784xf32>
    %cst_11 = arith.constant 1.000000e+00 : f32
    %17 = vector.broadcast %cst_11 : f32 to vector<8x784xf32>
    %18 = arith.addf %17, %16 : vector<8x784xf32>
    %19 = arith.divf %17, %18 : vector<8x784xf32>
    %20 = arith.truncf %19 : vector<8x784xf32> to vector<8x784xbf16>
    %c0_12 = arith.constant 0 : index
    %c0_13 = arith.constant 0 : index
    %21 = vector.load %arg6[%c0_12, %c0_13] : memref<8x784xbf16, #tpu.memory_space<vmem>>, vector<8x784xbf16>
    tpu.vector_store %arg6[%c0_12, %c0_13], %20 {strides = array<i32>} : memref<8x784xbf16, #tpu.memory_space<vmem>>, vector<8x784xbf16>,
    return
  }
  func.func @transform_0(%arg0: i32) -> (i32, i32) {
    %c0_i32 = arith.constant 0 : i32
    %c0_i32_0 = arith.constant 0 : i32
    return %arg0, %c0_i32 : i32, i32
  }
  func.func @transform_1(%arg0: i32) -> (i32, i32) {
    %c0_i32 = arith.constant 0 : i32
    %c0_i32_0 = arith.constant 0 : i32
    %c0_i32_1 = arith.constant 0 : i32
    return %c0_i32, %c0_i32_0 : i32, i32
  }
  func.func @transform_2(%arg0: i32) -> (i32, i32) {
    %c0_i32 = arith.constant 0 : i32
    %c0_i32_0 = arith.constant 0 : i32
    %c0_i32_1 = arith.constant 0 : i32
    return %c0_i32, %c0_i32_0 : i32, i32
  }
  func.func @transform_3(%arg0: i32) -> (i32, i32) {
    %c0_i32 = arith.constant 0 : i32
    %c0_i32_0 = arith.constant 0 : i32
    %c0_i32_1 = arith.constant 0 : i32
    return %c0_i32, %c0_i32_0 : i32, i32
  }
  func.func @transform_4(%arg0: i32) -> (i32, i32) {
    %c0_i32 = arith.constant 0 : i32
    %c0_i32_0 = arith.constant 0 : i32
    %c0_i32_1 = arith.constant 0 : i32
    return %c0_i32, %c0_i32_0 : i32, i32
  }
  func.func @transform_5(%arg0: i32) -> (i32, i32) {
    %c0_i32 = arith.constant 0 : i32
    %c0_i32_0 = arith.constant 0 : i32
    return %arg0, %c0_i32 : i32, i32
  }
}

</mosaic_0001>

<llo_original>
// kernel: tpu_custom_call.1
$region0: #{tpu_custom_call.1}
  #allocation0 [shape = 'u32[]', space=smem, size = 0x4, offset = 0x4, fixed_abs, tag = 'smem constant byte address 0x4 - core index']
  #allocation1 [shape = 'u32[144,128]{1,0:T(1,128)}', space=vmem, size = 0x12000, scoped, tag = 'internal scratch']
  %s0 = inlined_call_operand.vmem [shape: f32[8,784], index: 0, kind: input, shape index: {}]
  %s1 = inlined_call_operand.vmem [shape: bf16[784,256], index: 1, kind: input, shape index: {}]
  %s2 = inlined_call_operand.vmem [shape: f32[1,256], index: 2, kind: input, shape index: {}]
  %s3 = inlined_call_operand.vmem [shape: bf16[256,784], index: 3, kind: input, shape index: {}]
  %s4 = inlined_call_operand.vmem [shape: f32[1,784], index: 4, kind: input, shape index: {}]
  %s5 = inlined_call_operand.hbm [shape: bf16[8,784], index: 5, kind: output, shape index: {}]
  %s6 = sld [smem:[#allocation0]]
  $region30: #{tpu_custom_call.1} parent=0
    _
  %s8 = ssub.s32 1, %s6
  %s9 = scalar_select 0, %s8, %s6
  $region1: #{tpu_custom_call.1} parent=0
    #allocation2 [shape = 'u8[14336]{0}', space=vmem, size = 0x3800, scoped, tag = 'output window, operand 0, single buffered']
    #allocation3 [shape = 's32[1]{0}', space=sflag, size = 0x4, scoped, tag = 'scoped memory for tpu_custom_call.1']
    %10 = vsyncpa [#allocation3], 0
    // Predicated region
    $region2: #{tpu_custom_call.1} parent=1 // pred_check
      _
    $region3: #{tpu_custom_call.1} parent=1 // pred_check_branch
      %12 = sbr.rel (0) target = $region5
    $region4: #{tpu_custom_call.1} parent=1 // pred_region
      _
    $region5: #{tpu_custom_call.1} parent=1 // pred_fallthru
      _
    // Predicated region
    $region6: #{tpu_custom_call.1} parent=1 // pred_check
      _
    $region7: #{tpu_custom_call.1} parent=1 // pred_check_branch
      %14 = sbr.rel (0) target = $region9
    $region8: #{tpu_custom_call.1} parent=1 // pred_region
      _
    $region9: #{tpu_custom_call.1} parent=1 // pred_fallthru
      _
    // Predicated region
    $region10: #{tpu_custom_call.1} parent=1 // pred_check
      _
    $region11: #{tpu_custom_call.1} parent=1 // pred_check_branch
      %16 = sbr.rel (0) target = $region13
    $region12: #{tpu_custom_call.1} parent=1 // pred_region
      _
    $region13: #{tpu_custom_call.1} parent=1 // pred_fallthru
      _
    // Predicated region
    $region14: #{tpu_custom_call.1} parent=1 // pred_check
      _
    $region15: #{tpu_custom_call.1} parent=1 // pred_check_branch
      %18 = sbr.rel (0) target = $region17
    $region16: #{tpu_custom_call.1} parent=1 // pred_region
      _
    $region17: #{tpu_custom_call.1} parent=1 // pred_fallthru
      _
    // Predicated region
    $region18: #{tpu_custom_call.1} parent=1 // pred_check
      _
    $region19: #{tpu_custom_call.1} parent=1 // pred_check_branch
      %20 = sbr.rel (0) target = $region21
    $region20: #{tpu_custom_call.1} parent=1 // pred_region
      _
    $region21: #{tpu_custom_call.1} parent=1 // pred_fallthru
      _
    %v22 = vld [vmem:[%s0] sm:$0xff]
    %v23 = vld [vmem:[%s0 + $0x8] sm:$0xff]
    %v24 = vld [vmem:[%s0 + $0x10] sm:$0xff]
    %v25 = vld [vmem:[%s0 + $0x18] sm:$0xff]
    %v26 = vld [vmem:[%s0 + $0x20] sm:$0xff]
    %v27 = vld [vmem:[%s0 + $0x28] sm:$0xff]
    %v28 = vld [vmem:[%s0 + $0x30] sm:$0xff]
    %v29 = vpack.c.bf16 %v22, %v22
    %v30 = vpack.c.bf16 %v23, %v23
    %v31 = vpack.c.bf16 %v24, %v24
    %v32 = vpack.c.bf16 %v25, %v25
    %v33 = vpack.c.bf16 %v26, %v26
    %v34 = vpack.c.bf16 %v27, %v27
    %v35 = vpack.c.bf16 %v28, %v28
    %v36 = vld [vmem:[%s1] sm:$0xff]
    %v37 = vld [vmem:[%s1 + $0x8] sm:$0xff]
    %v38 = vld [vmem:[%s1 + $0x10] sm:$0xff]
    %v39 = vld [vmem:[%s1 + $0x18] sm:$0xff]
    %v40 = vld [vmem:[%s1 + $0x20] sm:$0xff]
    %v41 = vld [vmem:[%s1 + $0x28] sm:$0xff]
    %v42 = vld [vmem:[%s1 + $0x30] sm:$0xff]
    %v43 = vld [vmem:[%s1 + $0x38] sm:$0xff]
    %v44 = vld [vmem:[%s1 + $0x40] sm:$0xff]
    %v45 = vld [vmem:[%s1 + $0x48] sm:$0xff]
    %v46 = vld [vmem:[%s1 + $0x50] sm:$0xff]
    %v47 = vld [vmem:[%s1 + $0x58] sm:$0xff]
    %v48 = vld [vmem:[%s1 + $0x60] sm:$0xff]
    %v49 = vld [vmem:[%s1 + $0x68] sm:$0xff]
    %v50 = vld [vmem:[%s1 + $0x70] sm:$0xff]
    %v51 = vld [vmem:[%s1 + $0x78] sm:$0xff]
    %v52 = vld [vmem:[%s1 + $0x80] sm:$0xff]
    %v53 = vld [vmem:[%s1 + $0x88] sm:$0xff]
    %v54 = vld [vmem:[%s1 + $0x90] sm:$0xff]
    %v55 = vld [vmem:[%s1 + $0x98] sm:$0xff]
    %v56 = vld [vmem:[%s1 + $0xa0] sm:$0xff]
    %v57 = vld [vmem:[%s1 + $0xa8] sm:$0xff]
    %v58 = vld [vmem:[%s1 + $0xb0] sm:$0xff]
    %v59 = vld [vmem:[%s1 + $0xb8] sm:$0xff]
    %v60 = vld [vmem:[%s1 + $0xc0] sm:$0xff]
    %v61 = vld [vmem:[%s1 + $0xc8] sm:$0xff]
    %v62 = vld [vmem:[%s1 + $0xd0] sm:$0xff]
    %v63 = vld [vmem:[%s1 + $0xd8] sm:$0xff]
    %v64 = vld [vmem:[%s1 + $0xe0] sm:$0xff]
    %v65 = vld [vmem:[%s1 + $0xe8] sm:$0xff]
    %v66 = vld [vmem:[%s1 + $0xf0] sm:$0xff]
    %v67 = vld [vmem:[%s1 + $0xf8] sm:$0xff]
    %v68 = vld [vmem:[%s1 + $0x100] sm:$0xff]
    %v69 = vld [vmem:[%s1 + $0x108] sm:$0xff]
    %v70 = vld [vmem:[%s1 + $0x110] sm:$0xff]
    %v71 = vld [vmem:[%s1 + $0x118] sm:$0xff]
    %v72 = vld [vmem:[%s1 + $0x120] sm:$0xff]
    %v73 = vld [vmem:[%s1 + $0x128] sm:$0xff]
    %v74 = vld [vmem:[%s1 + $0x130] sm:$0xff]
    %v75 = vld [vmem:[%s1 + $0x138] sm:$0xff]
    %v76 = vld [vmem:[%s1 + $0x140] sm:$0xff]
    %v77 = vld [vmem:[%s1 + $0x148] sm:$0xff]
    %v78 = vld [vmem:[%s1 + $0x150] sm:$0xff]
    %v79 = vld [vmem:[%s1 + $0x158] sm:$0xff]
    %v80 = vld [vmem:[%s1 + $0x160] sm:$0xff]
    %v81 = vld [vmem:[%s1 + $0x168] sm:$0xff]
    %v82 = vld [vmem:[%s1 + $0x170] sm:$0xff]
    %v83 = vld [vmem:[%s1 + $0x178] sm:$0xff]
    %v84 = vld [vmem:[%s1 + $0x180] sm:$0xff]
    %v85 = vld [vmem:[%s1 + $0x188] sm:$0xff]
    %v86 = vld [vmem:[%s1 + $0x190] sm:$0xff]
    %v87 = vld [vmem:[%s1 + $0x198] sm:$0xff]
    %v88 = vld [vmem:[%s1 + $0x1a0] sm:$0xff]
    %v89 = vld [vmem:[%s1 + $0x1a8] sm:$0xff]
    %v90 = vld [vmem:[%s1 + $0x1b0] sm:$0xff]
    %v91 = vld [vmem:[%s1 + $0x1b8] sm:$0xff]
    %v92 = vld [vmem:[%s1 + $0x1c0] sm:$0xff]
    %v93 = vld [vmem:[%s1 + $0x1c8] sm:$0xff]
    %v94 = vld [vmem:[%s1 + $0x1d0] sm:$0xff]
    %v95 = vld [vmem:[%s1 + $0x1d8] sm:$0xff]
    %v96 = vld [vmem:[%s1 + $0x1e0] sm:$0xff]
    %v97 = vld [vmem:[%s1 + $0x1e8] sm:$0xff]
    %v98 = vld [vmem:[%s1 + $0x1f0] sm:$0xff]
    %v99 = vld [vmem:[%s1 + $0x1f8] sm:$0xff]
    %v100 = vld [vmem:[%s1 + $0x200] sm:$0xff]
    %v101 = vld [vmem:[%s1 + $0x208] sm:$0xff]
    %v102 = vld [vmem:[%s1 + $0x210] sm:$0xff]
    %v103 = vld [vmem:[%s1 + $0x218] sm:$0xff]
    %v104 = vld [vmem:[%s1 + $0x220] sm:$0xff]
    %v105 = vld [vmem:[%s1 + $0x228] sm:$0xff]
    %v106 = vld [vmem:[%s1 + $0x230] sm:$0xff]
    %v107 = vld [vmem:[%s1 + $0x238] sm:$0xff]
    %v108 = vld [vmem:[%s1 + $0x240] sm:$0xff]
    %v109 = vld [vmem:[%s1 + $0x248] sm:$0xff]
    %v110 = vld [vmem:[%s1 + $0x250] sm:$0xff]
    %v111 = vld [vmem:[%s1 + $0x258] sm:$0xff]
    %v112 = vld [vmem:[%s1 + $0x260] sm:$0xff]
    %v113 = vld [vmem:[%s1 + $0x268] sm:$0xff]
    %v114 = vld [vmem:[%s1 + $0x270] sm:$0xff]
    %v115 = vld [vmem:[%s1 + $0x278] sm:$0xff]
    %v116 = vld [vmem:[%s1 + $0x280] sm:$0xff]
    %v117 = vld [vmem:[%s1 + $0x288] sm:$0xff]
    %v118 = vld [vmem:[%s1 + $0x290] sm:$0xff]
    %v119 = vld [vmem:[%s1 + $0x298] sm:$0xff]
    %v120 = vld [vmem:[%s1 + $0x2a0] sm:$0xff]
    %v121 = vld [vmem:[%s1 + $0x2a8] sm:$0xff]
    %v122 = vld [vmem:[%s1 + $0x2b0] sm:$0xff]
    %v123 = vld [vmem:[%s1 + $0x2b8] sm:$0xff]
    %v124 = vld [vmem:[%s1 + $0x2c0] sm:$0xff]
    %v125 = vld [vmem:[%s1 + $0x2c8] sm:$0xff]
    %v126 = vld [vmem:[%s1 + $0x2d0] sm:$0xff]
    %v127 = vld [vmem:[%s1 + $0x2d8] sm:$0xff]
    %v128 = vld [vmem:[%s1 + $0x2e0] sm:$0xff]
    %v129 = vld [vmem:[%s1 + $0x2e8] sm:$0xff]
    %v130 = vld [vmem:[%s1 + $0x2f0] sm:$0xff]
    %v131 = vld [vmem:[%s1 + $0x2f8] sm:$0xff]
    %v132 = vld [vmem:[%s1 + $0x300] sm:$0xff]
    %v133 = vld [vmem:[%s1 + $0x308] sm:$0xff]
    %v134 = vld [vmem:[%s2] sm:$0x3]
    %v136 = vlaneseq
    %v137 = vshrl.u32 %v136, 7
    %v138 = vsub.s32 0, %v137
    %v139 = vrot.slane %v134, %v138
    %v140 = vlaneseq
    %v141 = vshrl.u32 %v140, 7
    %v142 = vsub.s32 1, %v141
    %v143 = vrot.slane %v134, %v142
    %v244 = vunpack.c.l.b16 %v36
    %v245 = vunpack.c.h.b16 %v36
    %v246 = vunpack.c.l.b16 %v37
    %v247 = vunpack.c.h.b16 %v37
    %v248 = vunpack.c.l.b16 %v38
    %v249 = vunpack.c.h.b16 %v38
    %v250 = vunpack.c.l.b16 %v39
    %v251 = vunpack.c.h.b16 %v39
    %v252 = vunpack.c.l.b16 %v40
    %v253 = vunpack.c.h.b16 %v40
    %v254 = vunpack.c.l.b16 %v41
    %v255 = vunpack.c.h.b16 %v41
    %v256 = vunpack.c.l.b16 %v42
    %v257 = vunpack.c.h.b16 %v42
    %v258 = vunpack.c.l.b16 %v43
    %v259 = vunpack.c.h.b16 %v43
    %v260 = vunpack.c.l.b16 %v44
    %v261 = vunpack.c.h.b16 %v44
    %v262 = vunpack.c.l.b16 %v45
    %v263 = vunpack.c.h.b16 %v45
    %v264 = vunpack.c.l.b16 %v46
    %v265 = vunpack.c.h.b16 %v46
    %v266 = vunpack.c.l.b16 %v47
    %v267 = vunpack.c.h.b16 %v47
    %v268 = vunpack.c.l.b16 %v48
    %v269 = vunpack.c.h.b16 %v48
    %v270 = vunpack.c.l.b16 %v49
    %v271 = vunpack.c.h.b16 %v49
    %v272 = vunpack.c.l.b16 %v50
    %v273 = vunpack.c.h.b16 %v50
    %v274 = vunpack.c.l.b16 %v51
    %v275 = vunpack.c.h.b16 %v51
    %v276 = vunpack.c.l.b16 %v52
    %v277 = vunpack.c.h.b16 %v52
    %v278 = vunpack.c.l.b16 %v53
    %v279 = vunpack.c.h.b16 %v53
    %v280 = vunpack.c.l.b16 %v54
    %v281 = vunpack.c.h.b16 %v54
    %v282 = vunpack.c.l.b16 %v55
    %v283 = vunpack.c.h.b16 %v55
    %v284 = vunpack.c.l.b16 %v56
    %v285 = vunpack.c.h.b16 %v56
    %v286 = vunpack.c.l.b16 %v57
    %v287 = vunpack.c.h.b16 %v57
    %v288 = vunpack.c.l.b16 %v58
    %v289 = vunpack.c.h.b16 %v58
    %v290 = vunpack.c.l.b16 %v59
    %v291 = vunpack.c.h.b16 %v59
    %v292 = vunpack.c.l.b16 %v60
    %v293 = vunpack.c.h.b16 %v60
    %v294 = vunpack.c.l.b16 %v61
    %v295 = vunpack.c.h.b16 %v61
    %v296 = vunpack.c.l.b16 %v62
    %v297 = vunpack.c.h.b16 %v62
    %v298 = vunpack.c.l.b16 %v63
    %v299 = vunpack.c.h.b16 %v63
    %v300 = vunpack.c.l.b16 %v64
    %v301 = vunpack.c.h.b16 %v64
    %v302 = vunpack.c.l.b16 %v65
    %v303 = vunpack.c.h.b16 %v65
    %v304 = vunpack.c.l.b16 %v66
    %v305 = vunpack.c.h.b16 %v66
    %v306 = vunpack.c.l.b16 %v67
    %v307 = vunpack.c.h.b16 %v67
    %v308 = vunpack.c.l.b16 %v68
    %v309 = vunpack.c.h.b16 %v68
    %v310 = vunpack.c.l.b16 %v69
    %v311 = vunpack.c.h.b16 %v69
    %v312 = vunpack.c.l.b16 %v70
    %v313 = vunpack.c.h.b16 %v70
    %v314 = vunpack.c.l.b16 %v71
    %v315 = vunpack.c.h.b16 %v71
    %v316 = vunpack.c.l.b16 %v72
    %v317 = vunpack.c.h.b16 %v72
    %v318 = vunpack.c.l.b16 %v73
    %v319 = vunpack.c.h.b16 %v73
    %v320 = vunpack.c.l.b16 %v74
    %v321 = vunpack.c.h.b16 %v74
    %v322 = vunpack.c.l.b16 %v75
    %v323 = vunpack.c.h.b16 %v75
    %v324 = vunpack.c.l.b16 %v76
    %v325 = vunpack.c.h.b16 %v76
    %v326 = vunpack.c.l.b16 %v77
    %v327 = vunpack.c.h.b16 %v77
    %v328 = vunpack.c.l.b16 %v78
    %v329 = vunpack.c.h.b16 %v78
    %v330 = vunpack.c.l.b16 %v79
    %v331 = vunpack.c.h.b16 %v79
    %v332 = vunpack.c.l.b16 %v80
    %v333 = vunpack.c.h.b16 %v80
    %v334 = vunpack.c.l.b16 %v81
    %v335 = vunpack.c.h.b16 %v81
    %v336 = vunpack.c.l.b16 %v82
    %v337 = vunpack.c.h.b16 %v82
    %v338 = vunpack.c.l.b16 %v83
    %v339 = vunpack.c.h.b16 %v83
    %v340 = vunpack.c.l.b16 %v84
    %v341 = vunpack.c.h.b16 %v84
    %v342 = vunpack.c.l.b16 %v85
    %v343 = vunpack.c.h.b16 %v85
    %v344 = vunpack.c.l.b16 %v86
    %v345 = vunpack.c.h.b16 %v86
    %v346 = vunpack.c.l.b16 %v87
    %v347 = vunpack.c.h.b16 %v87
    %v348 = vunpack.c.l.b16 %v88
    %v349 = vunpack.c.h.b16 %v88
    %v350 = vunpack.c.l.b16 %v89
    %v351 = vunpack.c.h.b16 %v89
    %v352 = vunpack.c.l.b16 %v90
    %v353 = vunpack.c.h.b16 %v90
    %v354 = vunpack.c.l.b16 %v91
    %v355 = vunpack.c.h.b16 %v91
    %v356 = vunpack.c.l.b16 %v92
    %v357 = vunpack.c.h.b16 %v92
    %v358 = vunpack.c.l.b16 %v93
    %v359 = vunpack.c.h.b16 %v93
    %v360 = vunpack.c.l.b16 %v94
    %v361 = vunpack.c.h.b16 %v94
    %v362 = vunpack.c.l.b16 %v95
    %v363 = vunpack.c.h.b16 %v95
    %v364 = vunpack.c.l.b16 %v96
    %v365 = vunpack.c.h.b16 %v96
    %v366 = vunpack.c.l.b16 %v97
    %v367 = vunpack.c.h.b16 %v97
    %v368 = vunpack.c.l.b16 %v98
    %v369 = vunpack.c.h.b16 %v98
    %v370 = vunpack.c.l.b16 %v99
    %v371 = vunpack.c.h.b16 %v99
    %v372 = vunpack.c.l.b16 %v100
    %v373 = vunpack.c.h.b16 %v100
    %v374 = vunpack.c.l.b16 %v101
    %v375 = vunpack.c.h.b16 %v101
    %v376 = vunpack.c.l.b16 %v102
    %v377 = vunpack.c.h.b16 %v102
    %v378 = vunpack.c.l.b16 %v103
    %v379 = vunpack.c.h.b16 %v103
    %v380 = vunpack.c.l.b16 %v104
    %v381 = vunpack.c.h.b16 %v104
    %v382 = vunpack.c.l.b16 %v105
    %v383 = vunpack.c.h.b16 %v105
    %v384 = vunpack.c.l.b16 %v106
    %v385 = vunpack.c.h.b16 %v106
    %v386 = vunpack.c.l.b16 %v107
    %v387 = vunpack.c.h.b16 %v107
    %v388 = vunpack.c.l.b16 %v108
    %v389 = vunpack.c.h.b16 %v108
    %v390 = vunpack.c.l.b16 %v109
    %v391 = vunpack.c.h.b16 %v109
    %v392 = vunpack.c.l.b16 %v110
    %v393 = vunpack.c.h.b16 %v110
    %v394 = vunpack.c.l.b16 %v111
    %v395 = vunpack.c.h.b16 %v111
    %v396 = vunpack.c.l.b16 %v112
    %v397 = vunpack.c.h.b16 %v112
    %v398 = vunpack.c.l.b16 %v113
    %v399 = vunpack.c.h.b16 %v113
    %v400 = vunpack.c.l.b16 %v114
    %v401 = vunpack.c.h.b16 %v114
    %v402 = vunpack.c.l.b16 %v115
    %v403 = vunpack.c.h.b16 %v115
    %v404 = vunpack.c.l.b16 %v116
    %v405 = vunpack.c.h.b16 %v116
    %v406 = vunpack.c.l.b16 %v117
    %v407 = vunpack.c.h.b16 %v117
    %v408 = vunpack.c.l.b16 %v118
    %v409 = vunpack.c.h.b16 %v118
    %v410 = vunpack.c.l.b16 %v119
    %v411 = vunpack.c.h.b16 %v119
    %v412 = vunpack.c.l.b16 %v120
    %v413 = vunpack.c.h.b16 %v120
    %v414 = vunpack.c.l.b16 %v121
    %v415 = vunpack.c.h.b16 %v121
    %v416 = vunpack.c.l.b16 %v122
    %v417 = vunpack.c.h.b16 %v122
    %v418 = vunpack.c.l.b16 %v123
    %v419 = vunpack.c.h.b16 %v123
    %v420 = vunpack.c.l.b16 %v124
    %v421 = vunpack.c.h.b16 %v124
    %v422 = vunpack.c.l.b16 %v125
    %v423 = vunpack.c.h.b16 %v125
    %v424 = vunpack.c.l.b16 %v126
    %v425 = vunpack.c.h.b16 %v126
    %v426 = vunpack.c.l.b16 %v127
    %v427 = vunpack.c.h.b16 %v127
    %v428 = vunpack.c.l.b16 %v128
    %v429 = vunpack.c.h.b16 %v128
    %v430 = vunpack.c.l.b16 %v129
    %v431 = vunpack.c.h.b16 %v129
    %v432 = vunpack.c.l.b16 %v130
    %v433 = vunpack.c.h.b16 %v130
    %v434 = vunpack.c.l.b16 %v131
    %v435 = vunpack.c.h.b16 %v131
    %v436 = vunpack.c.l.b16 %v132
    %v437 = vunpack.c.h.b16 %v132
    %v438 = vunpack.c.l.b16 %v133
    %v439 = vunpack.c.h.b16 %v133
    %v440 = vpack.c.b16 %v246, %v244
    %v441 = vpack.c.b16 %v247, %v245
    %v442 = vpack.c.b16 %v250, %v248
    %v443 = vpack.c.b16 %v251, %v249
    %v444 = vpack.c.b16 %v254, %v252
    %v445 = vpack.c.b16 %v255, %v253
    %v446 = vpack.c.b16 %v258, %v256
    %v447 = vpack.c.b16 %v259, %v257
    %v448 = vpack.c.b16 %v262, %v260
    %v449 = vpack.c.b16 %v263, %v261
    %v450 = vpack.c.b16 %v266, %v264
    %v451 = vpack.c.b16 %v267, %v265
    %v452 = vpack.c.b16 %v270, %v268
    %v453 = vpack.c.b16 %v271, %v269
    %v454 = vpack.c.b16 %v274, %v272
    %v455 = vpack.c.b16 %v275, %v273
    %v456 = vpack.c.b16 %v278, %v276
    %v457 = vpack.c.b16 %v279, %v277
    %v458 = vpack.c.b16 %v282, %v280
    %v459 = vpack.c.b16 %v283, %v281
    %v460 = vpack.c.b16 %v286, %v284
    %v461 = vpack.c.b16 %v287, %v285
    %v462 = vpack.c.b16 %v290, %v288
    %v463 = vpack.c.b16 %v291, %v289
    %v464 = vpack.c.b16 %v294, %v292
    %v465 = vpack.c.b16 %v295, %v293
    %v466 = vpack.c.b16 %v298, %v296
    %v467 = vpack.c.b16 %v299, %v297
    %v468 = vpack.c.b16 %v302, %v300
    %v469 = vpack.c.b16 %v303, %v301
    %v470 = vpack.c.b16 %v306, %v304
    %v471 = vpack.c.b16 %v307, %v305
    %v472 = vpack.c.b16 %v310, %v308
    %v473 = vpack.c.b16 %v311, %v309
    %v474 = vpack.c.b16 %v314, %v312
    %v475 = vpack.c.b16 %v315, %v313
    %v476 = vpack.c.b16 %v318, %v316
    %v477 = vpack.c.b16 %v319, %v317
    %v478 = vpack.c.b16 %v322, %v320
    %v479 = vpack.c.b16 %v323, %v321
    %v480 = vpack.c.b16 %v326, %v324
    %v481 = vpack.c.b16 %v327, %v325
    %v482 = vpack.c.b16 %v330, %v328
    %v483 = vpack.c.b16 %v331, %v329
    %v484 = vpack.c.b16 %v334, %v332
    %v485 = vpack.c.b16 %v335, %v333
    %v486 = vpack.c.b16 %v338, %v336
    %v487 = vpack.c.b16 %v339, %v337
    %v488 = vpack.c.b16 %v342, %v340
    %v489 = vpack.c.b16 %v343, %v341
    %v490 = vpack.c.b16 %v346, %v344
    %v491 = vpack.c.b16 %v347, %v345
    %v492 = vpack.c.b16 %v350, %v348
    %v493 = vpack.c.b16 %v351, %v349
    %v494 = vpack.c.b16 %v354, %v352
    %v495 = vpack.c.b16 %v355, %v353
    %v496 = vpack.c.b16 %v358, %v356
    %v497 = vpack.c.b16 %v359, %v357
    %v498 = vpack.c.b16 %v362, %v360
    %v499 = vpack.c.b16 %v363, %v361
    %v500 = vpack.c.b16 %v366, %v364
    %v501 = vpack.c.b16 %v367, %v365
    %v502 = vpack.c.b16 %v370, %v368
    %v503 = vpack.c.b16 %v371, %v369
    %v504 = vpack.c.b16 %v374, %v372
    %v505 = vpack.c.b16 %v375, %v373
    %v506 = vpack.c.b16 %v378, %v376
    %v507 = vpack.c.b16 %v379, %v377
    %v508 = vpack.c.b16 %v382, %v380
    %v509 = vpack.c.b16 %v383, %v381
    %v510 = vpack.c.b16 %v386, %v384
    %v511 = vpack.c.b16 %v387, %v385
    %v512 = vpack.c.b16 %v390, %v388
    %v513 = vpack.c.b16 %v391, %v389
    %v514 = vpack.c.b16 %v394, %v392
    %v515 = vpack.c.b16 %v395, %v393
    %v516 = vpack.c.b16 %v398, %v396
    %v517 = vpack.c.b16 %v399, %v397
    %v518 = vpack.c.b16 %v402, %v400
    %v519 = vpack.c.b16 %v403, %v401
    %v520 = vpack.c.b16 %v406, %v404
    %v521 = vpack.c.b16 %v407, %v405
    %v522 = vpack.c.b16 %v410, %v408
    %v523 = vpack.c.b16 %v411, %v409
    %v524 = vpack.c.b16 %v414, %v412
    %v525 = vpack.c.b16 %v415, %v413
    %v526 = vpack.c.b16 %v418, %v416
    %v527 = vpack.c.b16 %v419, %v417
    %v528 = vpack.c.b16 %v422, %v420
    %v529 = vpack.c.b16 %v423, %v421
    %v530 = vpack.c.b16 %v426, %v424
    %v531 = vpack.c.b16 %v427, %v425
    %v532 = vpack.c.b16 %v430, %v428
    %v533 = vpack.c.b16 %v431, %v429
    %v534 = vpack.c.b16 %v434, %v432
    %v535 = vpack.c.b16 %v435, %v433
    %v536 = vpack.c.b16 %v438, %v436
    %v537 = vpack.c.b16 %v439, %v437
    %vm636 = vcmask 130048
    %v638 = vsel %vm636, %v35, 0
    %640 = vmatprep.subr.bf16.mxu0 %v441
    %641 = vmatpush1.bf16.msra.mxu0 %v440
    %642 = vmatprep.subr.bf16.mxu0 %v443
    %643 = vmatpush1.bf16.msra.mxu0 %v442
    %644 = vmatprep.subr.bf16.mxu0 %v445
    %645 = vmatpush1.bf16.msra.mxu0 %v444
    %646 = vmatprep.subr.bf16.mxu0 %v447
    %647 = vmatpush1.bf16.msra.mxu0 %v446
    %648 = vmatprep.subr.bf16.mxu0 %v449
    %649 = vmatpush1.bf16.msra.mxu0 %v448
    %650 = vmatprep.subr.bf16.mxu0 %v451
    %651 = vmatpush1.bf16.msra.mxu0 %v450
    %652 = vmatprep.subr.bf16.mxu0 %v453
    %653 = vmatpush1.bf16.msra.mxu0 %v452
    %654 = vmatprep.subr.bf16.mxu0 %v455
    %655 = vmatpush1.bf16.msra.mxu0 %v454
    %656 = vmatprep.subr.bf16.mxu0 %v457
    %657 = vmatpush1.bf16.msra.mxu0 %v456
    %658 = vmatprep.subr.bf16.mxu0 %v459
    %659 = vmatpush1.bf16.msra.mxu0 %v458
    %660 = vmatprep.subr.bf16.mxu0 %v461
    %661 = vmatpush1.bf16.msra.mxu0 %v460
    %662 = vmatprep.subr.bf16.mxu0 %v463
    %663 = vmatpush1.bf16.msra.mxu0 %v462
    %664 = vmatprep.subr.bf16.mxu0 %v465
    %665 = vmatpush1.bf16.msra.mxu0 %v464
    %666 = vmatprep.subr.bf16.mxu0 %v467
    %667 = vmatpush1.bf16.msra.mxu0 %v466
    %668 = vmatprep.subr.bf16.mxu0 %v469
    %669 = vmatpush1.bf16.msra.mxu0 %v468
    %670 = vmatprep.subr.bf16.mxu0 %v471
    %671 = vmatpush1.bf16.msra.mxu0 %v470
    %672 = vmatprep.mubr.bf16.mxu0 %v30
    %673 = vmatmul.mubr.bf16.gmra.mrb[0].mxu0 %v29
    %v674 = vpop.f32.mrb[0].mxu0
    %v675 = vadd.f32 %v139, %v674
    %v676 = vpop.f32.mrb[0].mxu0
    %v677 = vadd.f32 %v143, %v676
    %v678 = vpop.f32.mrb[0].mxu0
    %v679 = vpop.f32.mrb[0].mxu0
    %680 = vdwg.mxu0
    %681 = vmatprep.subr.bf16.mxu0 %v473
    %682 = vmatpush1.bf16.msra.mxu0 %v472
    %683 = vmatprep.subr.bf16.mxu0 %v475
    %684 = vmatpush1.bf16.msra.mxu0 %v474
    %685 = vmatprep.subr.bf16.mxu0 %v477
    %686 = vmatpush1.bf16.msra.mxu0 %v476
    %687 = vmatprep.subr.bf16.mxu0 %v479
    %688 = vmatpush1.bf16.msra.mxu0 %v478
    %689 = vmatprep.subr.bf16.mxu0 %v481
    %690 = vmatpush1.bf16.msra.mxu0 %v480
    %691 = vmatprep.subr.bf16.mxu0 %v483
    %692 = vmatpush1.bf16.msra.mxu0 %v482
    %693 = vmatprep.subr.bf16.mxu0 %v485
    %694 = vmatpush1.bf16.msra.mxu0 %v484
    %695 = vmatprep.subr.bf16.mxu0 %v487
    %696 = vmatpush1.bf16.msra.mxu0 %v486
    %697 = vmatprep.subr.bf16.mxu0 %v489
    %698 = vmatpush1.bf16.msra.mxu0 %v488
    %699 = vmatprep.subr.bf16.mxu0 %v491
    %700 = vmatpush1.bf16.msra.mxu0 %v490
    %701 = vmatprep.subr.bf16.mxu0 %v493
    %702 = vmatpush1.bf16.msra.mxu0 %v492
    %703 = vmatprep.subr.bf16.mxu0 %v495
    %704 = vmatpush1.bf16.msra.mxu0 %v494
    %705 = vmatprep.subr.bf16.mxu0 %v497
    %706 = vmatpush1.bf16.msra.mxu0 %v496
    %707 = vmatprep.subr.bf16.mxu0 %v499
    %708 = vmatpush1.bf16.msra.mxu0 %v498
    %709 = vmatprep.subr.bf16.mxu0 %v501
    %710 = vmatpush1.bf16.msra.mxu0 %v500
    %711 = vmatprep.subr.bf16.mxu0 %v503
    %712 = vmatpush1.bf16.msra.mxu0 %v502
    %713 = vmatprep.mubr.bf16.mxu0 %v32
    %714 = vmatmul.mubr.bf16.gmra.mrb[0].mxu0 %v31
    %v715 = vpop.f32.mrb[0].mxu0
    %v716 = vadd.f32 %v675, %v715
    %v717 = vpop.f32.mrb[0].mxu0
    %v718 = vadd.f32 %v677, %v717
    %v719 = vpop.f32.mrb[0].mxu0
    %v720 = vpop.f32.mrb[0].mxu0
    %721 = vdwg.mxu0
    %722 = vmatprep.subr.bf16.mxu0 %v505
    %723 = vmatpush1.bf16.msra.mxu0 %v504
    %724 = vmatprep.subr.bf16.mxu0 %v507
    %725 = vmatpush1.bf16.msra.mxu0 %v506
    %726 = vmatprep.subr.bf16.mxu0 %v509
    %727 = vmatpush1.bf16.msra.mxu0 %v508
    %728 = vmatprep.subr.bf16.mxu0 %v511
    %729 = vmatpush1.bf16.msra.mxu0 %v510
    %730 = vmatprep.subr.bf16.mxu0 %v513
    %731 = vmatpush1.bf16.msra.mxu0 %v512
    %732 = vmatprep.subr.bf16.mxu0 %v515
    %733 = vmatpush1.bf16.msra.mxu0 %v514
    %734 = vmatprep.subr.bf16.mxu0 %v517
    %735 = vmatpush1.bf16.msra.mxu0 %v516
    %736 = vmatprep.subr.bf16.mxu0 %v519
    %737 = vmatpush1.bf16.msra.mxu0 %v518
    %738 = vmatprep.subr.bf16.mxu0 %v521
    %739 = vmatpush1.bf16.msra.mxu0 %v520
    %740 = vmatprep.subr.bf16.mxu0 %v523
    %741 = vmatpush1.bf16.msra.mxu0 %v522
    %742 = vmatprep.subr.bf16.mxu0 %v525
    %743 = vmatpush1.bf16.msra.mxu0 %v524
    %744 = vmatprep.subr.bf16.mxu0 %v527
    %745 = vmatpush1.bf16.msra.mxu0 %v526
    %746 = vmatprep.subr.bf16.mxu0 %v529
    %747 = vmatpush1.bf16.msra.mxu0 %v528
    %748 = vmatprep.subr.bf16.mxu0 %v531
    %749 = vmatpush1.bf16.msra.mxu0 %v530
    %750 = vmatprep.subr.bf16.mxu0 %v533
    %751 = vmatpush1.bf16.msra.mxu0 %v532
    %752 = vmatprep.subr.bf16.mxu0 %v535
    %753 = vmatpush1.bf16.msra.mxu0 %v534
    %754 = vmatprep.mubr.bf16.mxu0 %v34
    %755 = vmatmul.mubr.bf16.gmra.mrb[0].mxu0 %v33
    %v756 = vpop.f32.mrb[0].mxu0
    %v757 = vadd.f32 %v716, %v756
    %v758 = vpop.f32.mrb[0].mxu0
    %v759 = vadd.f32 %v718, %v758
    %v760 = vpop.f32.mrb[0].mxu0
    %v761 = vpop.f32.mrb[0].mxu0
    %762 = vdwg.mxu0
    %763 = vmatprep.subr.bf16.mxu0 %v537
    %764 = vmatpush1.bf16.msra.mxu0 %v536
    %765 = vmatprep.subr.bf16.mxu0 0
    %766 = vmatpush1.bf16.msra.mxu0 0
    %767 = vmatprep.subr.bf16.mxu0 0
    %768 = vmatpush1.bf16.msra.mxu0 0
    %769 = vmatprep.subr.bf16.mxu0 0
    %770 = vmatpush1.bf16.msra.mxu0 0
    %771 = vmatprep.subr.bf16.mxu0 0
    %772 = vmatpush1.bf16.msra.mxu0 0
    %773 = vmatprep.subr.bf16.mxu0 0
    %774 = vmatpush1.bf16.msra.mxu0 0
    %775 = vmatprep.subr.bf16.mxu0 0
    %776 = vmatpush1.bf16.msra.mxu0 0
    %777 = vmatprep.subr.bf16.mxu0 0
    %778 = vmatpush1.bf16.msra.mxu0 0
    %779 = vmatprep.subr.bf16.mxu0 0
    %780 = vmatpush1.bf16.msra.mxu0 0
    %781 = vmatprep.subr.bf16.mxu0 0
    %782 = vmatpush1.bf16.msra.mxu0 0
    %783 = vmatprep.subr.bf16.mxu0 0
    %784 = vmatpush1.bf16.msra.mxu0 0
    %785 = vmatprep.subr.bf16.mxu0 0
    %786 = vmatpush1.bf16.msra.mxu0 0
    %787 = vmatprep.subr.bf16.mxu0 0
    %788 = vmatpush1.bf16.msra.mxu0 0
    %789 = vmatprep.subr.bf16.mxu0 0
    %790 = vmatpush1.bf16.msra.mxu0 0
    %791 = vmatprep.subr.bf16.mxu0 0
    %792 = vmatpush1.bf16.msra.mxu0 0
    %793 = vmatprep.subr.bf16.mxu0 0
    %794 = vmatpush1.bf16.msra.mxu0 0
    %795 = vmatprep.mubr.bf16.mxu0 0
    %796 = vmatmul.mubr.bf16.gmra.mrb[0].mxu0 %v638
    %v797 = vpop.f32.mrb[0].mxu0
    %v798 = vadd.f32 %v757, %v797
    %v799 = vpop.f32.mrb[0].mxu0
    %v800 = vadd.f32 %v759, %v799
    %v801 = vpop.f32.mrb[0].mxu0
    %v802 = vpop.f32.mrb[0].mxu0
    %803 = vdwg.mxu0
    %v804 = vmax.f32 %v798, 0.0
    %v805 = vmax.f32 %v800, 0.0
    %v806 = vpack.c.bf16 %v804, %v804
    %v807 = vpack.c.bf16 %v805, %v805
    %v808 = vld [vmem:[%s3] sm:$0xff]
    %v809 = vld [vmem:[%s3 + $0x8] sm:$0xff]
    %v810 = vld [vmem:[%s3 + $0x10] sm:$0xff]
    %v811 = vld [vmem:[%s3 + $0x18] sm:$0xf]
    %v812 = vld [vmem:[%s3 + $0x1c] sm:$0xff]
    %v813 = vld [vmem:[%s3 + $0x24] sm:$0xff]
    %v814 = vld [vmem:[%s3 + $0x2c] sm:$0xff]
    %v815 = vld [vmem:[%s3 + $0x34] sm:$0xf]
    %v816 = vld [vmem:[%s3 + $0x38] sm:$0xff]
    %v817 = vld [vmem:[%s3 + $0x40] sm:$0xff]
    %v818 = vld [vmem:[%s3 + $0x48] sm:$0xff]
    %v819 = vld [vmem:[%s3 + $0x50] sm:$0xf]
    %v820 = vld [vmem:[%s3 + $0x54] sm:$0xff]
    %v821 = vld [vmem:[%s3 + $0x5c] sm:$0xff]
    %v822 = vld [vmem:[%s3 + $0x64] sm:$0xff]
    %v823 = vld [vmem:[%s3 + $0x6c] sm:$0xf]
    %v824 = vld [vmem:[%s3 + $0x70] sm:$0xff]
    %v825 = vld [vmem:[%s3 + $0x78] sm:$0xff]
    %v826 = vld [vmem:[%s3 + $0x80] sm:$0xff]
    %v827 = vld [vmem:[%s3 + $0x88] sm:$0xf]
    %v828 = vld [vmem:[%s3 + $0x8c] sm:$0xff]
    %v829 = vld [vmem:[%s3 + $0x94] sm:$0xff]
    %v830 = vld [vmem:[%s3 + $0x9c] sm:$0xff]
    %v831 = vld [vmem:[%s3 + $0xa4] sm:$0xf]
    %v832 = vld [vmem:[%s3 + $0xa8] sm:$0xff]
    %v833 = vld [vmem:[%s3 + $0xb0] sm:$0xff]
    %v834 = vld [vmem:[%s3 + $0xb8] sm:$0xff]
    %v835 = vld [vmem:[%s3 + $0xc0] sm:$0xf]
    %v836 = vld [vmem:[%s3 + $0xc4] sm:$0xff]
    %v837 = vld [vmem:[%s3 + $0xcc] sm:$0xff]
    %v838 = vld [vmem:[%s3 + $0xd4] sm:$0xff]
    %v839 = vld [vmem:[%s3 + $0xdc] sm:$0xf]
    %v840 = vld [vmem:[%s3 + $0xe0] sm:$0xff]
    %v841 = vld [vmem:[%s3 + $0xe8] sm:$0xff]
    %v842 = vld [vmem:[%s3 + $0xf0] sm:$0xff]
    %v843 = vld [vmem:[%s3 + $0xf8] sm:$0xf]
    %v844 = vld [vmem:[%s3 + $0xfc] sm:$0xff]
    %v845 = vld [vmem:[%s3 + $0x104] sm:$0xff]
    %v846 = vld [vmem:[%s3 + $0x10c] sm:$0xff]
    %v847 = vld [vmem:[%s3 + $0x114] sm:$0xf]
    %v848 = vld [vmem:[%s3 + $0x118] sm:$0xff]
    %v849 = vld [vmem:[%s3 + $0x120] sm:$0xff]
    %v850 = vld [vmem:[%s3 + $0x128] sm:$0xff]
    %v851 = vld [vmem:[%s3 + $0x130] sm:$0xf]
    %v852 = vld [vmem:[%s3 + $0x134] sm:$0xff]
    %v853 = vld [vmem:[%s3 + $0x13c] sm:$0xff]
    %v854 = vld [vmem:[%s3 + $0x144] sm:$0xff]
    %v855 = vld [vmem:[%s3 + $0x14c] sm:$0xf]
    %v856 = vld [vmem:[%s3 + $0x150] sm:$0xff]
    %v857 = vld [vmem:[%s3 + $0x158] sm:$0xff]
    %v858 = vld [vmem:[%s3 + $0x160] sm:$0xff]
    %v859 = vld [vmem:[%s3 + $0x168] sm:$0xf]
    %v860 = vld [vmem:[%s3 + $0x16c] sm:$0xff]
    %v861 = vld [vmem:[%s3 + $0x174] sm:$0xff]
    %v862 = vld [vmem:[%s3 + $0x17c] sm:$0xff]
    %v863 = vld [vmem:[%s3 + $0x184] sm:$0xf]
    %v864 = vld [vmem:[%s3 + $0x188] sm:$0xff]
    %v865 = vld [vmem:[%s3 + $0x190] sm:$0xff]
    %v866 = vld [vmem:[%s3 + $0x198] sm:$0xff]
    %v867 = vld [vmem:[%s3 + $0x1a0] sm:$0xf]
    %v868 = vld [vmem:[%s3 + $0x1a4] sm:$0xff]
    %v869 = vld [vmem:[%s3 + $0x1ac] sm:$0xff]
    %v870 = vld [vmem:[%s3 + $0x1b4] sm:$0xff]
    %v871 = vld [vmem:[%s3 + $0x1bc] sm:$0xf]
    %v872 = vld [vmem:[%s3 + $0x1c0] sm:$0xff]
    %v873 = vld [vmem:[%s3 + $0x1c8] sm:$0xff]
    %v874 = vld [vmem:[%s3 + $0x1d0] sm:$0xff]
    %v875 = vld [vmem:[%s3 + $0x1d8] sm:$0xf]
    %v876 = vld [vmem:[%s3 + $0x1dc] sm:$0xff]
    %v877 = vld [vmem:[%s3 + $0x1e4] sm:$0xff]
    %v878 = vld [vmem:[%s3 + $0x1ec] sm:$0xff]
    %v879 = vld [vmem:[%s3 + $0x1f4] sm:$0xf]
    %v880 = vld [vmem:[%s3 + $0x1f8] sm:$0xff]
    %v881 = vld [vmem:[%s3 + $0x200] sm:$0xff]
    %v882 = vld [vmem:[%s3 + $0x208] sm:$0xff]
    %v883 = vld [vmem:[%s3 + $0x210] sm:$0xf]
    %v884 = vld [vmem:[%s3 + $0x214] sm:$0xff]
    %v885 = vld [vmem:[%s3 + $0x21c] sm:$0xff]
    %v886 = vld [vmem:[%s3 + $0x224] sm:$0xff]
    %v887 = vld [vmem:[%s3 + $0x22c] sm:$0xf]
    %v888 = vld [vmem:[%s3 + $0x230] sm:$0xff]
    %v889 = vld [vmem:[%s3 + $0x238] sm:$0xff]
    %v890 = vld [vmem:[%s3 + $0x240] sm:$0xff]
    %v891 = vld [vmem:[%s3 + $0x248] sm:$0xf]
    %v892 = vld [vmem:[%s3 + $0x24c] sm:$0xff]
    %v893 = vld [vmem:[%s3 + $0x254] sm:$0xff]
    %v894 = vld [vmem:[%s3 + $0x25c] sm:$0xff]
    %v895 = vld [vmem:[%s3 + $0x264] sm:$0xf]
    %v896 = vld [vmem:[%s3 + $0x268] sm:$0xff]
    %v897 = vld [vmem:[%s3 + $0x270] sm:$0xff]
    %v898 = vld [vmem:[%s3 + $0x278] sm:$0xff]
    %v899 = vld [vmem:[%s3 + $0x280] sm:$0xf]
    %v900 = vld [vmem:[%s3 + $0x284] sm:$0xff]
    %v901 = vld [vmem:[%s3 + $0x28c] sm:$0xff]
    %v902 = vld [vmem:[%s3 + $0x294] sm:$0xff]
    %v903 = vld [vmem:[%s3 + $0x29c] sm:$0xf]
    %v904 = vld [vmem:[%s3 + $0x2a0] sm:$0xff]
    %v905 = vld [vmem:[%s3 + $0x2a8] sm:$0xff]
    %v906 = vld [vmem:[%s3 + $0x2b0] sm:$0xff]
    %v907 = vld [vmem:[%s3 + $0x2b8] sm:$0xf]
    %v908 = vld [vmem:[%s3 + $0x2bc] sm:$0xff]
    %v909 = vld [vmem:[%s3 + $0x2c4] sm:$0xff]
    %v910 = vld [vmem:[%s3 + $0x2cc] sm:$0xff]
    %v911 = vld [vmem:[%s3 + $0x2d4] sm:$0xf]
    %v912 = vld [vmem:[%s3 + $0x2d8] sm:$0xff]
    %v913 = vld [vmem:[%s3 + $0x2e0] sm:$0xff]
    %v914 = vld [vmem:[%s3 + $0x2e8] sm:$0xff]
    %v915 = vld [vmem:[%s3 + $0x2f0] sm:$0xf]
    %v916 = vld [vmem:[%s3 + $0x2f4] sm:$0xff]
    %v917 = vld [vmem:[%s3 + $0x2fc] sm:$0xff]
    %v918 = vld [vmem:[%s3 + $0x304] sm:$0xff]
    %v919 = vld [vmem:[%s3 + $0x30c] sm:$0xf]
    %v920 = vld [vmem:[%s3 + $0x310] sm:$0xff]
    %v921 = vld [vmem:[%s3 + $0x318] sm:$0xff]
    %v922 = vld [vmem:[%s3 + $0x320] sm:$0xff]
    %v923 = vld [vmem:[%s3 + $0x328] sm:$0xf]
    %v924 = vld [vmem:[%s3 + $0x32c] sm:$0xff]
    %v925 = vld [vmem:[%s3 + $0x334] sm:$0xff]
    %v926 = vld [vmem:[%s3 + $0x33c] sm:$0xff]
    %v927 = vld [vmem:[%s3 + $0x344] sm:$0xf]
    %v928 = vld [vmem:[%s3 + $0x348] sm:$0xff]
    %v929 = vld [vmem:[%s3 + $0x350] sm:$0xff]
    %v930 = vld [vmem:[%s3 + $0x358] sm:$0xff]
    %v931 = vld [vmem:[%s3 + $0x360] sm:$0xf]
    %v932 = vld [vmem:[%s3 + $0x364] sm:$0xff]
    %v933 = vld [vmem:[%s3 + $0x36c] sm:$0xff]
    %v934 = vld [vmem:[%s3 + $0x374] sm:$0xff]
    %v935 = vld [vmem:[%s3 + $0x37c] sm:$0xf]
    %v936 = vld [vmem:[%s4] sm:$0x7f]
    %v938 = vlaneseq
    %v939 = vshrl.u32 %v938, 7
    %v940 = vsub.s32 0, %v939
    %v941 = vrot.slane %v936, %v940
    %v942 = vlaneseq
    %v943 = vshrl.u32 %v942, 7
    %v944 = vsub.s32 1, %v943
    %v945 = vrot.slane %v936, %v944
    %v946 = vlaneseq
    %v947 = vshrl.u32 %v946, 7
    %v948 = vsub.s32 2, %v947
    %v949 = vrot.slane %v936, %v948
    %v950 = vlaneseq
    %v951 = vshrl.u32 %v950, 7
    %v952 = vsub.s32 3, %v951
    %v953 = vrot.slane %v936, %v952
    %v954 = vlaneseq
    %v955 = vshrl.u32 %v954, 7
    %v956 = vsub.s32 4, %v955
    %v957 = vrot.slane %v936, %v956
    %v958 = vlaneseq
    %v959 = vshrl.u32 %v958, 7
    %v960 = vsub.s32 5, %v959
    %v961 = vrot.slane %v936, %v960
    %v962 = vlaneseq
    %v963 = vshrl.u32 %v962, 7
    %v964 = vsub.s32 6, %v963
    %v965 = vrot.slane %v936, %v964
    %v1101 = vunpack.c.l.b16 %v808
    %v1102 = vunpack.c.h.b16 %v808
    %v1103 = vunpack.c.l.b16 %v809
    %v1104 = vunpack.c.h.b16 %v809
    %v1105 = vunpack.c.l.b16 %v810
    %v1106 = vunpack.c.h.b16 %v810
    %v1107 = vunpack.c.l.b16 %v811
    %v1108 = vunpack.c.l.b16 %v812
    %v1109 = vunpack.c.h.b16 %v812
    %v1110 = vunpack.c.l.b16 %v813
    %v1111 = vunpack.c.h.b16 %v813
    %v1112 = vunpack.c.l.b16 %v814
    %v1113 = vunpack.c.h.b16 %v814
    %v1114 = vunpack.c.l.b16 %v815
    %v1115 = vunpack.c.l.b16 %v816
    %v1116 = vunpack.c.h.b16 %v816
    %v1117 = vunpack.c.l.b16 %v817
    %v1118 = vunpack.c.h.b16 %v817
    %v1119 = vunpack.c.l.b16 %v818
    %v1120 = vunpack.c.h.b16 %v818
    %v1121 = vunpack.c.l.b16 %v819
    %v1122 = vunpack.c.l.b16 %v820
    %v1123 = vunpack.c.h.b16 %v820
    %v1124 = vunpack.c.l.b16 %v821
    %v1125 = vunpack.c.h.b16 %v821
    %v1126 = vunpack.c.l.b16 %v822
    %v1127 = vunpack.c.h.b16 %v822
    %v1128 = vunpack.c.l.b16 %v823
    %v1129 = vunpack.c.l.b16 %v824
    %v1130 = vunpack.c.h.b16 %v824
    %v1131 = vunpack.c.l.b16 %v825
    %v1132 = vunpack.c.h.b16 %v825
    %v1133 = vunpack.c.l.b16 %v826
    %v1134 = vunpack.c.h.b16 %v826
    %v1135 = vunpack.c.l.b16 %v827
    %v1136 = vunpack.c.l.b16 %v828
    %v1137 = vunpack.c.h.b16 %v828
    %v1138 = vunpack.c.l.b16 %v829
    %v1139 = vunpack.c.h.b16 %v829
    %v1140 = vunpack.c.l.b16 %v830
    %v1141 = vunpack.c.h.b16 %v830
    %v1142 = vunpack.c.l.b16 %v831
    %v1143 = vunpack.c.l.b16 %v832
    %v1144 = vunpack.c.h.b16 %v832
    %v1145 = vunpack.c.l.b16 %v833
    %v1146 = vunpack.c.h.b16 %v833
    %v1147 = vunpack.c.l.b16 %v834
    %v1148 = vunpack.c.h.b16 %v834
    %v1149 = vunpack.c.l.b16 %v835
    %v1150 = vunpack.c.l.b16 %v836
    %v1151 = vunpack.c.h.b16 %v836
    %v1152 = vunpack.c.l.b16 %v837
    %v1153 = vunpack.c.h.b16 %v837
    %v1154 = vunpack.c.l.b16 %v838
    %v1155 = vunpack.c.h.b16 %v838
    %v1156 = vunpack.c.l.b16 %v839
    %v1157 = vunpack.c.l.b16 %v840
    %v1158 = vunpack.c.h.b16 %v840
    %v1159 = vunpack.c.l.b16 %v841
    %v1160 = vunpack.c.h.b16 %v841
    %v1161 = vunpack.c.l.b16 %v842
    %v1162 = vunpack.c.h.b16 %v842
    %v1163 = vunpack.c.l.b16 %v843
    %v1164 = vunpack.c.l.b16 %v844
    %v1165 = vunpack.c.h.b16 %v844
    %v1166 = vunpack.c.l.b16 %v845
    %v1167 = vunpack.c.h.b16 %v845
    %v1168 = vunpack.c.l.b16 %v846
    %v1169 = vunpack.c.h.b16 %v846
    %v1170 = vunpack.c.l.b16 %v847
    %v1171 = vunpack.c.l.b16 %v848
    %v1172 = vunpack.c.h.b16 %v848
    %v1173 = vunpack.c.l.b16 %v849
    %v1174 = vunpack.c.h.b16 %v849
    %v1175 = vunpack.c.l.b16 %v850
    %v1176 = vunpack.c.h.b16 %v850
    %v1177 = vunpack.c.l.b16 %v851
    %v1178 = vunpack.c.l.b16 %v852
    %v1179 = vunpack.c.h.b16 %v852
    %v1180 = vunpack.c.l.b16 %v853
    %v1181 = vunpack.c.h.b16 %v853
    %v1182 = vunpack.c.l.b16 %v854
    %v1183 = vunpack.c.h.b16 %v854
    %v1184 = vunpack.c.l.b16 %v855
    %v1185 = vunpack.c.l.b16 %v856
    %v1186 = vunpack.c.h.b16 %v856
    %v1187 = vunpack.c.l.b16 %v857
    %v1188 = vunpack.c.h.b16 %v857
    %v1189 = vunpack.c.l.b16 %v858
    %v1190 = vunpack.c.h.b16 %v858
    %v1191 = vunpack.c.l.b16 %v859
    %v1192 = vunpack.c.l.b16 %v860
    %v1193 = vunpack.c.h.b16 %v860
    %v1194 = vunpack.c.l.b16 %v861
    %v1195 = vunpack.c.h.b16 %v861
    %v1196 = vunpack.c.l.b16 %v862
    %v1197 = vunpack.c.h.b16 %v862
    %v1198 = vunpack.c.l.b16 %v863
    %v1199 = vunpack.c.l.b16 %v864
    %v1200 = vunpack.c.h.b16 %v864
    %v1201 = vunpack.c.l.b16 %v865
    %v1202 = vunpack.c.h.b16 %v865
    %v1203 = vunpack.c.l.b16 %v866
    %v1204 = vunpack.c.h.b16 %v866
    %v1205 = vunpack.c.l.b16 %v867
    %v1206 = vunpack.c.l.b16 %v868
    %v1207 = vunpack.c.h.b16 %v868
    %v1208 = vunpack.c.l.b16 %v869
    %v1209 = vunpack.c.h.b16 %v869
    %v1210 = vunpack.c.l.b16 %v870
    %v1211 = vunpack.c.h.b16 %v870
    %v1212 = vunpack.c.l.b16 %v871
    %v1213 = vunpack.c.l.b16 %v872
    %v1214 = vunpack.c.h.b16 %v872
    %v1215 = vunpack.c.l.b16 %v873
    %v1216 = vunpack.c.h.b16 %v873
    %v1217 = vunpack.c.l.b16 %v874
    %v1218 = vunpack.c.h.b16 %v874
    %v1219 = vunpack.c.l.b16 %v875
    %v1220 = vunpack.c.l.b16 %v876
    %v1221 = vunpack.c.h.b16 %v876
    %v1222 = vunpack.c.l.b16 %v877
    %v1223 = vunpack.c.h.b16 %v877
    %v1224 = vunpack.c.l.b16 %v878
    %v1225 = vunpack.c.h.b16 %v878
    %v1226 = vunpack.c.l.b16 %v879
    %v1227 = vunpack.c.l.b16 %v880
    %v1228 = vunpack.c.h.b16 %v880
    %v1229 = vunpack.c.l.b16 %v881
    %v1230 = vunpack.c.h.b16 %v881
    %v1231 = vunpack.c.l.b16 %v882
    %v1232 = vunpack.c.h.b16 %v882
    %v1233 = vunpack.c.l.b16 %v883
    %v1234 = vunpack.c.l.b16 %v884
    %v1235 = vunpack.c.h.b16 %v884
    %v1236 = vunpack.c.l.b16 %v885
    %v1237 = vunpack.c.h.b16 %v885
    %v1238 = vunpack.c.l.b16 %v886
    %v1239 = vunpack.c.h.b16 %v886
    %v1240 = vunpack.c.l.b16 %v887
    %v1241 = vunpack.c.l.b16 %v888
    %v1242 = vunpack.c.h.b16 %v888
    %v1243 = vunpack.c.l.b16 %v889
    %v1244 = vunpack.c.h.b16 %v889
    %v1245 = vunpack.c.l.b16 %v890
    %v1246 = vunpack.c.h.b16 %v890
    %v1247 = vunpack.c.l.b16 %v891
    %v1248 = vunpack.c.l.b16 %v892
    %v1249 = vunpack.c.h.b16 %v892
    %v1250 = vunpack.c.l.b16 %v893
    %v1251 = vunpack.c.h.b16 %v893
    %v1252 = vunpack.c.l.b16 %v894
    %v1253 = vunpack.c.h.b16 %v894
    %v1254 = vunpack.c.l.b16 %v895
    %v1255 = vunpack.c.l.b16 %v896
    %v1256 = vunpack.c.h.b16 %v896
    %v1257 = vunpack.c.l.b16 %v897
    %v1258 = vunpack.c.h.b16 %v897
    %v1259 = vunpack.c.l.b16 %v898
    %v1260 = vunpack.c.h.b16 %v898
    %v1261 = vunpack.c.l.b16 %v899
    %v1262 = vunpack.c.l.b16 %v900
    %v1263 = vunpack.c.h.b16 %v900
    %v1264 = vunpack.c.l.b16 %v901
    %v1265 = vunpack.c.h.b16 %v901
    %v1266 = vunpack.c.l.b16 %v902
    %v1267 = vunpack.c.h.b16 %v902
    %v1268 = vunpack.c.l.b16 %v903
    %v1269 = vunpack.c.l.b16 %v904
    %v1270 = vunpack.c.h.b16 %v904
    %v1271 = vunpack.c.l.b16 %v905
    %v1272 = vunpack.c.h.b16 %v905
    %v1273 = vunpack.c.l.b16 %v906
    %v1274 = vunpack.c.h.b16 %v906
    %v1275 = vunpack.c.l.b16 %v907
    %v1276 = vunpack.c.l.b16 %v908
    %v1277 = vunpack.c.h.b16 %v908
    %v1278 = vunpack.c.l.b16 %v909
    %v1279 = vunpack.c.h.b16 %v909
    %v1280 = vunpack.c.l.b16 %v910
    %v1281 = vunpack.c.h.b16 %v910
    %v1282 = vunpack.c.l.b16 %v911
    %v1283 = vunpack.c.l.b16 %v912
    %v1284 = vunpack.c.h.b16 %v912
    %v1285 = vunpack.c.l.b16 %v913
    %v1286 = vunpack.c.h.b16 %v913
    %v1287 = vunpack.c.l.b16 %v914
    %v1288 = vunpack.c.h.b16 %v914
    %v1289 = vunpack.c.l.b16 %v915
    %v1290 = vunpack.c.l.b16 %v916
    %v1291 = vunpack.c.h.b16 %v916
    %v1292 = vunpack.c.l.b16 %v917
    %v1293 = vunpack.c.h.b16 %v917
    %v1294 = vunpack.c.l.b16 %v918
    %v1295 = vunpack.c.h.b16 %v918
    %v1296 = vunpack.c.l.b16 %v919
    %v1297 = vunpack.c.l.b16 %v920
    %v1298 = vunpack.c.h.b16 %v920
    %v1299 = vunpack.c.l.b16 %v921
    %v1300 = vunpack.c.h.b16 %v921
    %v1301 = vunpack.c.l.b16 %v922
    %v1302 = vunpack.c.h.b16 %v922
    %v1303 = vunpack.c.l.b16 %v923
    %v1304 = vunpack.c.l.b16 %v924
    %v1305 = vunpack.c.h.b16 %v924
    %v1306 = vunpack.c.l.b16 %v925
    %v1307 = vunpack.c.h.b16 %v925
    %v1308 = vunpack.c.l.b16 %v926
    %v1309 = vunpack.c.h.b16 %v926
    %v1310 = vunpack.c.l.b16 %v927
    %v1311 = vunpack.c.l.b16 %v928
    %v1312 = vunpack.c.h.b16 %v928
    %v1313 = vunpack.c.l.b16 %v929
    %v1314 = vunpack.c.h.b16 %v929
    %v1315 = vunpack.c.l.b16 %v930
    %v1316 = vunpack.c.h.b16 %v930
    %v1317 = vunpack.c.l.b16 %v931
    %v1318 = vunpack.c.l.b16 %v932
    %v1319 = vunpack.c.h.b16 %v932
    %v1320 = vunpack.c.l.b16 %v933
    %v1321 = vunpack.c.h.b16 %v933
    %v1322 = vunpack.c.l.b16 %v934
    %v1323 = vunpack.c.h.b16 %v934
    %v1324 = vunpack.c.l.b16 %v935
    %v1325 = vpack.c.b16 %v1108, %v1101
    %v1326 = vpack.c.b16 %v1109, %v1102
    %v1327 = vpack.c.b16 %v1110, %v1103
    %v1328 = vpack.c.b16 %v1111, %v1104
    %v1329 = vpack.c.b16 %v1112, %v1105
    %v1330 = vpack.c.b16 %v1113, %v1106
    %v1331 = vpack.c.b16 %v1114, %v1107
    %v1332 = vpack.c.b16 %v1122, %v1115
    %v1333 = vpack.c.b16 %v1123, %v1116
    %v1334 = vpack.c.b16 %v1124, %v1117
    %v1335 = vpack.c.b16 %v1125, %v1118
    %v1336 = vpack.c.b16 %v1126, %v1119
    %v1337 = vpack.c.b16 %v1127, %v1120
    %v1338 = vpack.c.b16 %v1128, %v1121
    %v1339 = vpack.c.b16 %v1136, %v1129
    %v1340 = vpack.c.b16 %v1137, %v1130
    %v1341 = vpack.c.b16 %v1138, %v1131
    %v1342 = vpack.c.b16 %v1139, %v1132
    %v1343 = vpack.c.b16 %v1140, %v1133
    %v1344 = vpack.c.b16 %v1141, %v1134
    %v1345 = vpack.c.b16 %v1142, %v1135
    %v1346 = vpack.c.b16 %v1150, %v1143
    %v1347 = vpack.c.b16 %v1151, %v1144
    %v1348 = vpack.c.b16 %v1152, %v1145
    %v1349 = vpack.c.b16 %v1153, %v1146
    %v1350 = vpack.c.b16 %v1154, %v1147
    %v1351 = vpack.c.b16 %v1155, %v1148
    %v1352 = vpack.c.b16 %v1156, %v1149
    %v1353 = vpack.c.b16 %v1164, %v1157
    %v1354 = vpack.c.b16 %v1165, %v1158
    %v1355 = vpack.c.b16 %v1166, %v1159
    %v1356 = vpack.c.b16 %v1167, %v1160
    %v1357 = vpack.c.b16 %v1168, %v1161
    %v1358 = vpack.c.b16 %v1169, %v1162
    %v1359 = vpack.c.b16 %v1170, %v1163
    %v1360 = vpack.c.b16 %v1178, %v1171
    %v1361 = vpack.c.b16 %v1179, %v1172
    %v1362 = vpack.c.b16 %v1180, %v1173
    %v1363 = vpack.c.b16 %v1181, %v1174
    %v1364 = vpack.c.b16 %v1182, %v1175
    %v1365 = vpack.c.b16 %v1183, %v1176
    %v1366 = vpack.c.b16 %v1184, %v1177
    %v1367 = vpack.c.b16 %v1192, %v1185
    %v1368 = vpack.c.b16 %v1193, %v1186
    %v1369 = vpack.c.b16 %v1194, %v1187
    %v1370 = vpack.c.b16 %v1195, %v1188
    %v1371 = vpack.c.b16 %v1196, %v1189
    %v1372 = vpack.c.b16 %v1197, %v1190
    %v1373 = vpack.c.b16 %v1198, %v1191
    %v1374 = vpack.c.b16 %v1206, %v1199
    %v1375 = vpack.c.b16 %v1207, %v1200
    %v1376 = vpack.c.b16 %v1208, %v1201
    %v1377 = vpack.c.b16 %v1209, %v1202
    %v1378 = vpack.c.b16 %v1210, %v1203
    %v1379 = vpack.c.b16 %v1211, %v1204
    %v1380 = vpack.c.b16 %v1212, %v1205
    %v1381 = vpack.c.b16 %v1220, %v1213
    %v1382 = vpack.c.b16 %v1221, %v1214
    %v1383 = vpack.c.b16 %v1222, %v1215
    %v1384 = vpack.c.b16 %v1223, %v1216
    %v1385 = vpack.c.b16 %v1224, %v1217
    %v1386 = vpack.c.b16 %v1225, %v1218
    %v1387 = vpack.c.b16 %v1226, %v1219
    %v1388 = vpack.c.b16 %v1234, %v1227
    %v1389 = vpack.c.b16 %v1235, %v1228
    %v1390 = vpack.c.b16 %v1236, %v1229
    %v1391 = vpack.c.b16 %v1237, %v1230
    %v1392 = vpack.c.b16 %v1238, %v1231
    %v1393 = vpack.c.b16 %v1239, %v1232
    %v1394 = vpack.c.b16 %v1240, %v1233
    %v1395 = vpack.c.b16 %v1248, %v1241
    %v1396 = vpack.c.b16 %v1249, %v1242
    %v1397 = vpack.c.b16 %v1250, %v1243
    %v1398 = vpack.c.b16 %v1251, %v1244
    %v1399 = vpack.c.b16 %v1252, %v1245
    %v1400 = vpack.c.b16 %v1253, %v1246
    %v1401 = vpack.c.b16 %v1254, %v1247
    %v1402 = vpack.c.b16 %v1262, %v1255
    %v1403 = vpack.c.b16 %v1263, %v1256
    %v1404 = vpack.c.b16 %v1264, %v1257
    %v1405 = vpack.c.b16 %v1265, %v1258
    %v1406 = vpack.c.b16 %v1266, %v1259
    %v1407 = vpack.c.b16 %v1267, %v1260
    %v1408 = vpack.c.b16 %v1268, %v1261
    %v1409 = vpack.c.b16 %v1276, %v1269
    %v1410 = vpack.c.b16 %v1277, %v1270
    %v1411 = vpack.c.b16 %v1278, %v1271
    %v1412 = vpack.c.b16 %v1279, %v1272
    %v1413 = vpack.c.b16 %v1280, %v1273
    %v1414 = vpack.c.b16 %v1281, %v1274
    %v1415 = vpack.c.b16 %v1282, %v1275
    %v1416 = vpack.c.b16 %v1290, %v1283
    %v1417 = vpack.c.b16 %v1291, %v1284
    %v1418 = vpack.c.b16 %v1292, %v1285
    %v1419 = vpack.c.b16 %v1293, %v1286
    %v1420 = vpack.c.b16 %v1294, %v1287
    %v1421 = vpack.c.b16 %v1295, %v1288
    %v1422 = vpack.c.b16 %v1296, %v1289
    %v1423 = vpack.c.b16 %v1304, %v1297
    %v1424 = vpack.c.b16 %v1305, %v1298
    %v1425 = vpack.c.b16 %v1306, %v1299
    %v1426 = vpack.c.b16 %v1307, %v1300
    %v1427 = vpack.c.b16 %v1308, %v1301
    %v1428 = vpack.c.b16 %v1309, %v1302
    %v1429 = vpack.c.b16 %v1310, %v1303
    %v1430 = vpack.c.b16 %v1318, %v1311
    %v1431 = vpack.c.b16 %v1319, %v1312
    %v1432 = vpack.c.b16 %v1320, %v1313
    %v1433 = vpack.c.b16 %v1321, %v1314
    %v1434 = vpack.c.b16 %v1322, %v1315
    %v1435 = vpack.c.b16 %v1323, %v1316
    %v1436 = vpack.c.b16 %v1324, %v1317
    %1549 = vmatprep.subr.bf16.mxu0 %v1326
    %1550 = vmatpush1.bf16.msra.mxu0 %v1325
    %1551 = vmatprep.subr.bf16.mxu0 %v1333
    %1552 = vmatpush1.bf16.msra.mxu0 %v1332
    %1553 = vmatprep.subr.bf16.mxu0 %v1340
    %1554 = vmatpush1.bf16.msra.mxu0 %v1339
    %1555 = vmatprep.subr.bf16.mxu0 %v1347
    %1556 = vmatpush1.bf16.msra.mxu0 %v1346
    %1557 = vmatprep.subr.bf16.mxu0 %v1354
    %1558 = vmatpush1.bf16.msra.mxu0 %v1353
    %1559 = vmatprep.subr.bf16.mxu0 %v1361
    %1560 = vmatpush1.bf16.msra.mxu0 %v1360
    %1561 = vmatprep.subr.bf16.mxu0 %v1368
    %1562 = vmatpush1.bf16.msra.mxu0 %v1367
    %1563 = vmatprep.subr.bf16.mxu0 %v1375
    %1564 = vmatpush1.bf16.msra.mxu0 %v1374
    %1565 = vmatprep.subr.bf16.mxu0 %v1382
    %1566 = vmatpush1.bf16.msra.mxu0 %v1381
    %1567 = vmatprep.subr.bf16.mxu0 %v1389
    %1568 = vmatpush1.bf16.msra.mxu0 %v1388
    %1569 = vmatprep.subr.bf16.mxu0 %v1396
    %1570 = vmatpush1.bf16.msra.mxu0 %v1395
    %1571 = vmatprep.subr.bf16.mxu0 %v1403
    %1572 = vmatpush1.bf16.msra.mxu0 %v1402
    %1573 = vmatprep.subr.bf16.mxu0 %v1410
    %1574 = vmatpush1.bf16.msra.mxu0 %v1409
    %1575 = vmatprep.subr.bf16.mxu0 %v1417
    %1576 = vmatpush1.bf16.msra.mxu0 %v1416
    %1577 = vmatprep.subr.bf16.mxu0 %v1424
    %1578 = vmatpush1.bf16.msra.mxu0 %v1423
    %1579 = vmatprep.subr.bf16.mxu0 %v1431
    %1580 = vmatpush1.bf16.msra.mxu0 %v1430
    %1581 = vmatprep.mubr.bf16.mxu0 %v807
    %1582 = vmatmul.mubr.bf16.gmra.mrb[0].mxu0 %v806
    %v1583 = vpop.f32.mrb[0].mxu0
    %v1584 = vadd.f32 %v941, %v1583
    %v1585 = vpop.f32.mrb[0].mxu0
    %v1586 = vadd.f32 %v945, %v1585
    %v1587 = vpop.f32.mrb[0].mxu0
    %v1588 = vpop.f32.mrb[0].mxu0
    %1589 = vdwg.mxu0
    %1590 = vmatprep.subr.bf16.mxu0 %v1328
    %1591 = vmatpush1.bf16.msra.mxu0 %v1327
    %1592 = vmatprep.subr.bf16.mxu0 %v1335
    %1593 = vmatpush1.bf16.msra.mxu0 %v1334
    %1594 = vmatprep.subr.bf16.mxu0 %v1342
    %1595 = vmatpush1.bf16.msra.mxu0 %v1341
    %1596 = vmatprep.subr.bf16.mxu0 %v1349
    %1597 = vmatpush1.bf16.msra.mxu0 %v1348
    %1598 = vmatprep.subr.bf16.mxu0 %v1356
    %1599 = vmatpush1.bf16.msra.mxu0 %v1355
    %1600 = vmatprep.subr.bf16.mxu0 %v1363
    %1601 = vmatpush1.bf16.msra.mxu0 %v1362
    %1602 = vmatprep.subr.bf16.mxu0 %v1370
    %1603 = vmatpush1.bf16.msra.mxu0 %v1369
    %1604 = vmatprep.subr.bf16.mxu0 %v1377
    %1605 = vmatpush1.bf16.msra.mxu0 %v1376
    %1606 = vmatprep.subr.bf16.mxu0 %v1384
    %1607 = vmatpush1.bf16.msra.mxu0 %v1383
    %1608 = vmatprep.subr.bf16.mxu0 %v1391
    %1609 = vmatpush1.bf16.msra.mxu0 %v1390
    %1610 = vmatprep.subr.bf16.mxu0 %v1398
    %1611 = vmatpush1.bf16.msra.mxu0 %v1397
    %1612 = vmatprep.subr.bf16.mxu0 %v1405
    %1613 = vmatpush1.bf16.msra.mxu0 %v1404
    %1614 = vmatprep.subr.bf16.mxu0 %v1412
    %1615 = vmatpush1.bf16.msra.mxu0 %v1411
    %1616 = vmatprep.subr.bf16.mxu0 %v1419
    %1617 = vmatpush1.bf16.msra.mxu0 %v1418
    %1618 = vmatprep.subr.bf16.mxu0 %v1426
    %1619 = vmatpush1.bf16.msra.mxu0 %v1425
    %1620 = vmatprep.subr.bf16.mxu0 %v1433
    %1621 = vmatpush1.bf16.msra.mxu0 %v1432
    %1622 = vmatprep.mubr.bf16.mxu0 %v807
    %1623 = vmatmul.mubr.bf16.gmra.mrb[0].mxu0 %v806
    %v1624 = vpop.f32.mrb[0].mxu0
    %v1625 = vadd.f32 %v949, %v1624
    %v1626 = vpop.f32.mrb[0].mxu0
    %v1627 = vadd.f32 %v953, %v1626
    %v1628 = vpop.f32.mrb[0].mxu0
    %v1629 = vpop.f32.mrb[0].mxu0
    %1630 = vdwg.mxu0
    %1631 = vmatprep.subr.bf16.mxu0 %v1330
    %1632 = vmatpush1.bf16.msra.mxu0 %v1329
    %1633 = vmatprep.subr.bf16.mxu0 %v1337
    %1634 = vmatpush1.bf16.msra.mxu0 %v1336
    %1635 = vmatprep.subr.bf16.mxu0 %v1344
    %1636 = vmatpush1.bf16.msra.mxu0 %v1343
    %1637 = vmatprep.subr.bf16.mxu0 %v1351
    %1638 = vmatpush1.bf16.msra.mxu0 %v1350
    %1639 = vmatprep.subr.bf16.mxu0 %v1358
    %1640 = vmatpush1.bf16.msra.mxu0 %v1357
    %1641 = vmatprep.subr.bf16.mxu0 %v1365
    %1642 = vmatpush1.bf16.msra.mxu0 %v1364
    %1643 = vmatprep.subr.bf16.mxu0 %v1372
    %1644 = vmatpush1.bf16.msra.mxu0 %v1371
    %1645 = vmatprep.subr.bf16.mxu0 %v1379
    %1646 = vmatpush1.bf16.msra.mxu0 %v1378
    %1647 = vmatprep.subr.bf16.mxu0 %v1386
    %1648 = vmatpush1.bf16.msra.mxu0 %v1385
    %1649 = vmatprep.subr.bf16.mxu0 %v1393
    %1650 = vmatpush1.bf16.msra.mxu0 %v1392
    %1651 = vmatprep.subr.bf16.mxu0 %v1400
    %1652 = vmatpush1.bf16.msra.mxu0 %v1399
    %1653 = vmatprep.subr.bf16.mxu0 %v1407
    %1654 = vmatpush1.bf16.msra.mxu0 %v1406
    %1655 = vmatprep.subr.bf16.mxu0 %v1414
    %1656 = vmatpush1.bf16.msra.mxu0 %v1413
    %1657 = vmatprep.subr.bf16.mxu0 %v1421
    %1658 = vmatpush1.bf16.msra.mxu0 %v1420
    %1659 = vmatprep.subr.bf16.mxu0 %v1428
    %1660 = vmatpush1.bf16.msra.mxu0 %v1427
    %1661 = vmatprep.subr.bf16.mxu0 %v1435
    %1662 = vmatpush1.bf16.msra.mxu0 %v1434
    %1663 = vmatprep.mubr.bf16.mxu0 %v807
    %1664 = vmatmul.mubr.bf16.gmra.mrb[0].mxu0 %v806
    %v1665 = vpop.f32.mrb[0].mxu0
    %v1666 = vadd.f32 %v957, %v1665
    %v1667 = vpop.f32.mrb[0].mxu0
    %v1668 = vadd.f32 %v961, %v1667
    %v1669 = vpop.f32.mrb[0].mxu0
    %v1670 = vpop.f32.mrb[0].mxu0
    %1671 = vdwg.mxu0
    %1672 = vmatprep.subr.bf16.mxu0 0
    %1673 = vmatpush1.bf16.msra.mxu0 %v1331
    %1674 = vmatprep.subr.bf16.mxu0 0
    %1675 = vmatpush1.bf16.msra.mxu0 %v1338
    %1676 = vmatprep.subr.bf16.mxu0 0
    %1677 = vmatpush1.bf16.msra.mxu0 %v1345
    %1678 = vmatprep.subr.bf16.mxu0 0
    %1679 = vmatpush1.bf16.msra.mxu0 %v1352
    %1680 = vmatprep.subr.bf16.mxu0 0
    %1681 = vmatpush1.bf16.msra.mxu0 %v1359
    %1682 = vmatprep.subr.bf16.mxu0 0
    %1683 = vmatpush1.bf16.msra.mxu0 %v1366
    %1684 = vmatprep.subr.bf16.mxu0 0
    %1685 = vmatpush1.bf16.msra.mxu0 %v1373
    %1686 = vmatprep.subr.bf16.mxu0 0
    %1687 = vmatpush1.bf16.msra.mxu0 %v1380
    %1688 = vmatprep.subr.bf16.mxu0 0
    %1689 = vmatpush1.bf16.msra.mxu0 %v1387
    %1690 = vmatprep.subr.bf16.mxu0 0
    %1691 = vmatpush1.bf16.msra.mxu0 %v1394
    %1692 = vmatprep.subr.bf16.mxu0 0
    %1693 = vmatpush1.bf16.msra.mxu0 %v1401
    %1694 = vmatprep.subr.bf16.mxu0 0
    %1695 = vmatpush1.bf16.msra.mxu0 %v1408
    %1696 = vmatprep.subr.bf16.mxu0 0
    %1697 = vmatpush1.bf16.msra.mxu0 %v1415
    %1698 = vmatprep.subr.bf16.mxu0 0
    %1699 = vmatpush1.bf16.msra.mxu0 %v1422
    %1700 = vmatprep.subr.bf16.mxu0 0
    %1701 = vmatpush1.bf16.msra.mxu0 %v1429
    %1702 = vmatprep.subr.bf16.mxu0 0
    %1703 = vmatpush1.bf16.msra.mxu0 %v1436
    %1704 = vmatprep.mubr.bf16.mxu0 %v807
    %1705 = vmatmul.mubr.bf16.gmra.mrb[0].mxu0 %v806
    %v1706 = vpop.f32.mrb[0].mxu0
    %v1707 = vadd.f32 %v965, %v1706
    %v1708 = vpop.f32.mrb[0].mxu0
    %v1709 = vpop.f32.mrb[0].mxu0
    %v1710 = vpop.f32.mrb[0].mxu0
    %1711 = vdwg.mxu0
    %v1712 = vxor.u32 %v1584, 2147483648
    %v1713 = vxor.u32 %v1586, 2147483648
    %v1714 = vxor.u32 %v1625, 2147483648
    %v1715 = vxor.u32 %v1627, 2147483648
    %v1716 = vxor.u32 %v1666, 2147483648
    %v1717 = vxor.u32 %v1668, 2147483648
    %v1718 = vxor.u32 %v1707, 2147483648
    %v1719 = vmul.f32 %v1712, 1.442695
    %v1720 = vpow.pop %v1719
    %v1721 = vmul.f32 %v1713, 1.442695
    %v1722 = vpow.pop %v1721
    %v1723 = vmul.f32 %v1714, 1.442695
    %v1724 = vpow.pop %v1723
    %v1725 = vmul.f32 %v1715, 1.442695
    %v1726 = vpow.pop %v1725
    %v1727 = vmul.f32 %v1716, 1.442695
    %v1728 = vpow.pop %v1727
    %v1729 = vmul.f32 %v1717, 1.442695
    %v1730 = vpow.pop %v1729
    %v1731 = vmul.f32 %v1718, 1.442695
    %v1732 = vpow.pop %v1731
    %v1733 = vadd.f32 %v1720, 1.0
    %v1734 = vadd.f32 %v1722, 1.0
    %v1735 = vadd.f32 %v1724, 1.0
    %v1736 = vadd.f32 %v1726, 1.0
    %v1737 = vadd.f32 %v1728, 1.0
    %v1738 = vadd.f32 %v1730, 1.0
    %v1739 = vadd.f32 %v1732, 1.0
    %v1740 = vrcp.pop %v1733
    %v1741 = vmul.f32 1.0, %v1740
    %v1742 = vrcp.pop %v1734
    %v1743 = vmul.f32 1.0, %v1742
    %v1744 = vrcp.pop %v1735
    %v1745 = vmul.f32 1.0, %v1744
    %v1746 = vrcp.pop %v1736
    %v1747 = vmul.f32 1.0, %v1746
    %v1748 = vrcp.pop %v1737
    %v1749 = vmul.f32 1.0, %v1748
    %v1750 = vrcp.pop %v1738
    %v1751 = vmul.f32 1.0, %v1750
    %v1752 = vrcp.pop %v1739
    %v1753 = vmul.f32 1.0, %v1752
    %v1754 = vpack.c.bf16 %v1741, %v1741
    %v1755 = vpack.c.bf16 %v1743, %v1743
    %v1756 = vpack.c.bf16 %v1745, %v1745
    %v1757 = vpack.c.bf16 %v1747, %v1747
    %v1758 = vpack.c.bf16 %v1749, %v1749
    %v1759 = vpack.c.bf16 %v1751, %v1751
    %v1760 = vpack.c.bf16 %v1753, %v1753
    %v1768 = vunpack.c.l.b16 %v1754
    %v1769 = vunpack.c.l.b16 %v1755
    %v1770 = vunpack.c.l.b16 %v1756
    %v1771 = vunpack.c.l.b16 %v1757
    %v1772 = vunpack.c.l.b16 %v1758
    %v1773 = vunpack.c.l.b16 %v1759
    %v1774 = vunpack.c.l.b16 %v1760
    %v1775 = vpack.c.b16 %v1769, %v1768
    %v1776 = vpack.c.b16 %v1771, %v1770
    %v1777 = vpack.c.b16 %v1773, %v1772
    %v1778 = vpack.c.b16 %v1774, %v1774
    %1783 = vst [vmem:[#allocation2] sm:$0xff] %v1775
    %1784 = vst [vmem:[#allocation2 + $0x8] sm:$0xff] %v1776
    %1785 = vst [vmem:[#allocation2 + $0x10] sm:$0xff] %v1777
    %vm1786 = vcmask 125952
    %1787 = vst.msk [vmem:[#allocation2 + $0x18] sm:$0xf] %vm1786, %v1778
    // Predicated region
    $region22: #{tpu_custom_call.1} parent=1 // pred_check
      _
    $region23: #{tpu_custom_call.1} parent=1 // pred_check_branch
      %1789 = sbr.rel (0) target = $region25
    $region24: #{tpu_custom_call.1} parent=1 // pred_region
      %s1791 = ssub.s32 448, 448
      %1792 = vsyncadd [#allocation3], %s1791
      %s1794 = sshll.u32 [#allocation2], 4
      %s1795 = int_to_ptr.vmem [resolvable:$true] %s1794
      %1797 = dma.vmem_to_hbm [thread:$0]  %s1795, 448, %s5, [#allocation3]
    $region25: #{tpu_custom_call.1} parent=1 // pred_fallthru
      _
    // Predicated region
    $region26: #{tpu_custom_call.1} parent=1 // pred_check
      _
    $region27: #{tpu_custom_call.1} parent=1 // pred_check_branch
      %1799 = sbr.rel (0) target = $region29
    $region28: #{tpu_custom_call.1} parent=1 // pred_region
      %1800 = dma.done [#allocation3], 448
    $region29: #{tpu_custom_call.1} parent=1 // pred_fallthru
      _
    %1801 = vsyncpa [#allocation3], 1

</llo_original>
